<compile_context>
chip_gen: v7x
topology: tpu7x:2x2x1
jax: 0.10.0
libtpu: 0.0.40
codegen_flags: <defaults>
</compile_context>

<pallas_src>
import functools
import math

import jax
import jax.numpy as jnp
from jax.experimental import pallas as pl
from jax.experimental.pallas import tpu as pltpu


# ---------------------------------------------------------------------------
# Kernels
# ---------------------------------------------------------------------------


def _normalize_rows(x):
    """(x - mean) / unbiased_std along the last axis (f32 in, f32 out)."""
    f = x.shape[-1]
    mean = jnp.mean(x, axis=-1, keepdims=True)
    c = x - mean
    denom = max(f - 1, 1)                              # torch's unbiased std
    var = jnp.sum(c * c, axis=-1, keepdims=True) / denom
    # eps keeps zero-variance (and zero-padded) rows finite.
    return c * jax.lax.rsqrt(var + 1e-12)


def _masked_log_softmax(o, n_classes):
    """Log-softmax over the lane-padded class axis (padded lanes masked out)."""
    col = jax.lax.broadcasted_iota(jnp.int32, o.shape, 1)
    o = jnp.where(col < n_classes, o, -1e30)
    m = jnp.max(o, axis=-1, keepdims=True)
    z = o - m
    lse = jnp.log(jnp.sum(jnp.exp(z), axis=-1, keepdims=True))
    return z - lse


def gcnn_fused_kernel(x_ref, ahat_ref, w1_ref, b1_ref, w2_ref, b2_ref, out_ref,
                      *, n_classes, compute_dtype):
    """Whole forward pass in one VMEM-resident kernel (small-graph path)."""
    xn = _normalize_rows(x_ref[...])                                  # (NP, F) f32
    h0 = jnp.dot(xn.astype(compute_dtype), w1_ref[...],
                 preferred_element_type=jnp.float32) + b1_ref[...]    # (NP, HP)
    ahat = ahat_ref[...]                                              # (NP, NP) bf16
    h1 = jnp.maximum(
        jnp.dot(ahat, h0.astype(compute_dtype),
                preferred_element_type=jnp.float32), 0.0)             # (NP, HP)
    # TODO(synk): F.dropout(p=0.5, training=True) is stochastic; eval-mode
    # identity implemented here (training parity would use pltpu.prng_*).
    h2 = jnp.dot(h1.astype(compute_dtype), w2_ref[...],
                 preferred_element_type=jnp.float32) + b2_ref[...]    # (NP, CP)
    o = jnp.dot(ahat, h2.astype(compute_dtype),
                preferred_element_type=jnp.float32)                   # (NP, CP)
    out_ref[...] = _masked_log_softmax(o, n_classes)


def normalize_project_kernel(x_ref, w1_ref, b1_ref, h0_ref, *, compute_dtype):
    """Row-tiled: H0 = normalize(X) @ W1 + b1   (hidden padded to 128 lanes)."""
    xn = _normalize_rows(x_ref[...])
    h0 = jnp.dot(xn.astype(compute_dtype), w1_ref[...],
                 preferred_element_type=jnp.float32) + b1_ref[...]
    h0_ref[...] = h0.astype(h0_ref.dtype)


def gcn_layer1_kernel(ahat_ref, h0_ref, w2_ref, b2_ref, h2_ref, acc_ref,
                      *, compute_dtype):
    """Grid (rows, reduction): acc += A_hat_tile @ H0_tile ; epilogue:
       H2 = relu(acc) @ W2 + b2   (class axis padded to 128 lanes)."""
    k = pl.program_id(1)

    @pl.when(k == 0)
    def _init():
        acc_ref[...] = jnp.zeros_like(acc_ref)

    acc_ref[...] += jnp.dot(ahat_ref[...], h0_ref[...],
                            preferred_element_type=jnp.float32)

    @pl.when(k == pl.num_programs(1) - 1)
    def _finalize():
        h1 = jnp.maximum(acc_ref[...], 0.0).astype(compute_dtype)
        # TODO(synk): dropout treated as eval-mode identity (see fused kernel).
        h2 = jnp.dot(h1, w2_ref[...],
                     preferred_element_type=jnp.float32) + b2_ref[...]
        h2_ref[...] = h2.astype(h2_ref.dtype)


def gcn_layer2_kernel(ahat_ref, h2_ref, out_ref, acc_ref, *, n_classes):
    """Grid (rows, reduction): acc += A_hat_tile @ H2_tile ; epilogue:
       lane-masked log-softmax over the (padded) class axis."""
    k = pl.program_id(1)

    @pl.when(k == 0)
    def _init():
        acc_ref[...] = jnp.zeros_like(acc_ref)

    acc_ref[...] += jnp.dot(ahat_ref[...], h2_ref[...],
                            preferred_element_type=jnp.float32)

    @pl.when(k == pl.num_programs(1) - 1)
    def _finalize():
        out_ref[...] = _masked_log_softmax(acc_ref[...], n_classes)


# ---------------------------------------------------------------------------
# Wrapper
# ---------------------------------------------------------------------------


def _round_up(x, m):
    return (x + m - 1) // m * m


def _vmem_limit(*buffer_bytes, double_buffered=True):
    mult = 2 if double_buffered else 1
    need = mult * sum(int(b) for b in buffer_bytes) + (8 << 20)   # slack
    # Cap below v7x's 64 MiB physical VMEM to leave double-buffer/compiler
    # headroom; v5e/v6e (128 MiB) are trivially fine at this cap.
    return int(min(max(need, 32 << 20), 48 << 20))


def gcnn_forward(A, feature, W1, W1_bias, W2, W2_bias, *, compute_dtype=jnp.bfloat16):
    f32 = jnp.float32
    A = A.astype(f32)
    X = feature.astype(f32)
    N, F = X.shape
    H = W1.shape[1]
    C = W2.shape[1]

    HP = _round_up(H, 128)          # lane-dense hidden
    CP = _round_up(C, 128)          # lane-dense class axis
    cb = jnp.dtype(compute_dtype).itemsize

    # ---- A_hat precomputed once (bf16) in the same fusion that pads A.
    #      Padding is mathematically inert: padded rows/cols are exactly zero.
    deg = jnp.sum(A, axis=1) + 1.0                      # rowsum of (I + A)
    inv_sqrt = jax.lax.rsqrt(deg)
    a_hat = (inv_sqrt[:, None] * (A + jnp.eye(N, dtype=f32))) * inv_sqrt[None, :]

    # ---- padded weights / bias (bf16 weights for MXU, f32 biases post-accum)
    W1p = jnp.zeros((F, HP), compute_dtype).at[:, :H].set(W1.astype(compute_dtype))
    b1p = jnp.zeros((1, HP), f32).at[0, :H].set(W1_bias.reshape(-1).astype(f32))
    W2p = jnp.zeros((HP, CP), compute_dtype).at[:H, :C].set(W2.astype(compute_dtype))
    b2p = jnp.zeros((1, CP), f32).at[0, :C].set(W2_bias.reshape(-1).astype(f32))

    # -------------------------------------------------------------------
    # Small-graph path: everything VMEM-resident, one fused pallas_call.
    # -------------------------------------------------------------------
    NP_s = _round_up(N, 128)
    small_bytes = (NP_s * NP_s * cb + NP_s * F * 4 + F * HP * cb + HP * 4
                   + HP * CP * cb + CP * 4 + NP_s * CP * 4
                   + 3 * NP_s * HP * 4)                 # kernel intermediates
    if NP_s <= 1024 and small_bytes <= (40 << 20):
        NP = NP_s
        A_hat_p = jnp.zeros((NP, NP), compute_dtype).at[:N, :N].set(
            a_hat.astype(compute_dtype))
        X_p = jnp.zeros((NP, F), f32).at[:N, :].set(X)

        out_p = pl.pallas_call(
            functools.partial(gcnn_fused_kernel, n_classes=C,
                              compute_dtype=compute_dtype),
            out_shape=jax.ShapeDtypeStruct((NP, CP), jnp.float32),
            compiler_params=pltpu.CompilerParams(
                vmem_limit_bytes=_vmem_limit(small_bytes, double_buffered=False),
            ),
            cost_estimate=pl.CostEstimate(
                flops=2 * NP * F * HP + 4 * NP * NP * HP + 2 * NP * HP * CP
                      + 2 * NP * NP * CP,
                transcendentals=NP * (CP + 2),
                bytes_accessed=NP * NP * cb + NP * F * 4 + F * HP * cb
                               + HP * CP * cb + NP * CP * 4,
            ),
        )(X_p, A_hat_p, W1p, b1p, W2p, b2p)
        return out_p[:N, :C]

    # -------------------------------------------------------------------
    # Large-graph path: tiled A_hat GEMMs (rows x reduction grid).
    # -------------------------------------------------------------------
    TM = 512                         # grid_rows >= 2 -> v7x 2-TC sharding
    TK = 1024
    NP = _round_up(N, max(TM, TK))

    A_hat_p = jnp.zeros((NP, NP), compute_dtype).at[:N, :N].set(
        a_hat.astype(compute_dtype))
    X_p = jnp.zeros((NP, F), f32).at[:N, :].set(X)

    grid_rows = NP // TM
    grid_red = NP // TK

    # ---- stage 1: H0 = normalize(X) @ W1 + b1  (row-tiled, lane-dense output)
    h0 = pl.pallas_call(
        functools.partial(normalize_project_kernel, compute_dtype=compute_dtype),
        out_shape=jax.ShapeDtypeStruct((NP, HP), compute_dtype),
        grid_spec=pltpu.PrefetchScalarGridSpec(
            num_scalar_prefetch=0,
            grid=(grid_rows,),
            in_specs=[
                pl.BlockSpec((TM, F), lambda i: (i, 0)),
                pl.BlockSpec((F, HP), lambda i: (0, 0)),
                pl.BlockSpec((1, HP), lambda i: (0, 0)),
            ],
            out_specs=pl.BlockSpec((TM, HP), lambda i: (i, 0)),
        ),
        compiler_params=pltpu.CompilerParams(
            dimension_semantics=("parallel",),
            vmem_limit_bytes=_vmem_limit(TM * F * 4, F * HP * cb, HP * 4,
                                         TM * HP * cb),
        ),
        cost_estimate=pl.CostEstimate(
            flops=2 * NP * F * HP + 6 * NP * F,
            transcendentals=NP,
            bytes_accessed=NP * F * 4 + F * HP * cb + HP * 4 + NP * HP * cb,
        ),
    )(X_p, W1p, b1p)

    # ---- stage 2: H2 = relu(A_hat @ H0) @ W2 + b2   (tiled GEMM, fused epilogue)
    h2 = pl.pallas_call(
        functools.partial(gcn_layer1_kernel, compute_dtype=compute_dtype),
        out_shape=jax.ShapeDtypeStruct((NP, CP), compute_dtype),
        grid_spec=pltpu.PrefetchScalarGridSpec(
            num_scalar_prefetch=0,
            grid=(grid_rows, grid_red),
            in_specs=[
                pl.BlockSpec((TM, TK), lambda i, k: (i, k)),   # A_hat tile (bf16)
                pl.BlockSpec((TK, HP), lambda i, k: (k, 0)),   # H0 tile
                pl.BlockSpec((HP, CP), lambda i, k: (0, 0)),   # W2 (resident)
                pl.BlockSpec((1, CP), lambda i, k: (0, 0)),    # b2 (resident)
            ],
            out_specs=pl.BlockSpec((TM, CP), lambda i, k: (i, 0)),
            scratch_shapes=[pltpu.VMEM((TM, HP), jnp.float32)],
        ),
        compiler_params=pltpu.CompilerParams(
            dimension_semantics=("parallel", "arbitrary"),
            vmem_limit_bytes=_vmem_limit(TM * TK * cb, TK * HP * cb, HP * CP * cb,
                                         CP * 4, TM * CP * cb, TM * HP * 4),
        ),
        cost_estimate=pl.CostEstimate(
            flops=2 * NP * NP * HP + 2 * NP * HP * CP,
            transcendentals=0,
            bytes_accessed=NP * NP * cb + NP * HP * cb + NP * CP * cb
                           + HP * CP * cb,
        ),
    )(A_hat_p, h0, W2p, b2p)

    # ---- stage 3: out = log_softmax(A_hat @ H2)   (tiled GEMM, lane-dense out)
    out_p = pl.pallas_call(
        functools.partial(gcn_layer2_kernel, n_classes=C),
        out_shape=jax.ShapeDtypeStruct((NP, CP), jnp.float32),
        grid_spec=pltpu.PrefetchScalarGridSpec(
            num_scalar_prefetch=0,
            grid=(grid_rows, grid_red),
            in_specs=[
                pl.BlockSpec((TM, TK), lambda i, k: (i, k)),   # A_hat tile (bf16)
                pl.BlockSpec((TK, CP), lambda i, k: (k, 0)),   # H2 tile
            ],
            out_specs=pl.BlockSpec((TM, CP), lambda i, k: (i, 0)),
            scratch_shapes=[pltpu.VMEM((TM, CP), jnp.float32)],
        ),
        compiler_params=pltpu.CompilerParams(
            dimension_semantics=("parallel", "arbitrary"),
            vmem_limit_bytes=_vmem_limit(TM * TK * cb, TK * CP * cb,
                                         TM * CP * 4, TM * CP * 4),
        ),
        cost_estimate=pl.CostEstimate(
            flops=2 * NP * NP * CP,
            transcendentals=NP * CP + NP,
            bytes_accessed=NP * NP * cb + NP * CP * cb + NP * CP * 4,
        ),
    )(A_hat_p, h2)

    return out_p[:N, :C]


# ---------------------------------------------------------------------------
# Pure-JAX reference (f32) for a loose correctness check
# ---------------------------------------------------------------------------


def _reference_forward(A, X, W1, b1, W2, b2):
    A = A.astype(jnp.float32)
    X = X.astype(jnp.float32)
    f = X.shape[-1]
    mean = jnp.mean(X, axis=-1, keepdims=True)
    c = X - mean
    std = jnp.sqrt(jnp.sum(c * c, axis=-1, keepdims=True) / (f - 1))
    xn = c / std
    n = A.shape[0]
    mt = jnp.eye(n, dtype=jnp.float32) + A
    inv_sqrt = 1.0 / jnp.sqrt(jnp.sum(mt, axis=1))
    a_hat = inv_sqrt[:, None] * mt * inv_sqrt[None, :]
    h = jnp.maximum(a_hat @ (xn @ W1 + b1.reshape(1, -1)), 0.0)
    o = a_hat @ (h @ W2 + b2.reshape(1, -1))
    return jax.nn.log_softmax(o, axis=1)


def xavier_uniform(key, fan_in, fan_out):
    bound = math.sqrt(6.0 / (fan_in + fan_out))
    return jax.random.uniform(
        key, (fan_in, fan_out), minval=-bound, maxval=bound, dtype=jnp.float32
    )


if __name__ == "__main__":
    # Small, GCN-consistent shapes: 16 nodes, 32 input features, 32 hidden, 8 classes.
    N_NODES, N_INPUT, H_WEIGHT, N_OUTPUT = 16, 32, 32, 8

    key = jax.random.PRNGKey(0)
    k_a, k_f, k_w1, k_b1, k_w2, k_b2 = jax.random.split(key, 6)

    A_raw = jax.random.uniform(k_a, (N_NODES, N_NODES), dtype=jnp.float32)
    A = (A_raw > 0.7).astype(jnp.float32)
    A = jnp.maximum(A, A.T)  # symmetric adjacency (rowsums of I+A >= 1)

    feature = jax.random.normal(k_f, (N_NODES, N_INPUT), dtype=jnp.float32)

    W1 = xavier_uniform(k_w1, N_INPUT, H_WEIGHT)
    W1_bias = jax.random.normal(k_b1, (H_WEIGHT,), dtype=jnp.float32)
    W2 = xavier_uniform(k_w2, H_WEIGHT, N_OUTPUT)
    W2_bias = jax.random.normal(k_b2, (N_OUTPUT,), dtype=jnp.float32)

    out = gcnn_forward(A, feature, W1, W1_bias, W2, W2_bias)
    jax.block_until_ready(out)

    assert out.shape == (N_NODES, N_OUTPUT)
    # log-softmax rows must exponentiate-sum to 1 (padded lanes correctly masked)
    assert bool(jnp.all(jnp.abs(jnp.sum(jnp.exp(out), axis=1) - 1.0) < 1e-3))

    # Loose comparison vs f32 reference (kernel uses bf16 MXU inputs, f32 accum).
    ref = _reference_forward(A, feature, W1, W1_bias, W2, W2_bias)
    max_err = float(jnp.max(jnp.abs(out - ref)))
    assert max_err < 0.5, f"max abs err vs reference too large: {max_err}"

    print("KERNEL_OK")
</pallas_src>

<mosaic_0001>
module attributes {stable_mosaic.version = 11 : i64} {
  func.func @gcnn_fused_kernel(%arg0: memref<128x32xf32, #tpu.memory_space<vmem>>, %arg1: memref<128x128xbf16, #tpu.memory_space<vmem>>, %arg2: memref<32x128xbf16, #tpu.memory_space<vmem>>, %arg3: memref<1x128xf32, #tpu.memory_space<vmem>>, %arg4: memref<128x128xbf16, #tpu.memory_space<vmem>>, %arg5: memref<1x128xf32, #tpu.memory_space<vmem>>, %arg6: memref<128x128xf32, #tpu.memory_space<vmem>>) attributes {dimension_semantics = [], scalar_prefetch = 0 : i64, scratch_operands = 0 : i64, tpu.core_type = #tpu.core_type<tc>} {
    %c0 = arith.constant 0 : index
    %c0_0 = arith.constant 0 : index
    %0 = vector.load %arg0[%c0, %c0_0] : memref<128x32xf32, #tpu.memory_space<vmem>>, vector<128x32xf32>
    %cst = arith.constant dense<0.000000e+00> : vector<128xf32>
    %1 = vector.multi_reduction <add>, %0, %cst [1] : vector<128x32xf32> to vector<128xf32>
    %2 = vector.shape_cast %1 : vector<128xf32> to vector<128x1xf32>
    %cst_1 = arith.constant 3.200000e+01 : f32
    %3 = vector.broadcast %cst_1 : f32 to vector<128x1xf32>
    %4 = arith.divf %2, %3 : vector<128x1xf32>
    %5 = vector.broadcast %4 : vector<128x1xf32> to vector<128x32xf32>
    %6 = arith.subf %0, %5 : vector<128x32xf32>
    %7 = arith.mulf %6, %6 : vector<128x32xf32>
    %cst_2 = arith.constant dense<0.000000e+00> : vector<128xf32>
    %8 = vector.multi_reduction <add>, %7, %cst_2 [1] : vector<128x32xf32> to vector<128xf32>
    %9 = vector.shape_cast %8 : vector<128xf32> to vector<128x1xf32>
    %cst_3 = arith.constant 3.100000e+01 : f32
    %10 = vector.broadcast %cst_3 : f32 to vector<128x1xf32>
    %11 = arith.divf %9, %10 : vector<128x1xf32>
    %cst_4 = arith.constant 9.99999996E-13 : f32
    %12 = vector.broadcast %cst_4 : f32 to vector<128x1xf32>
    %13 = arith.addf %11, %12 : vector<128x1xf32>
    %14 = math.rsqrt %13 : vector<128x1xf32>
    %15 = vector.broadcast %14 : vector<128x1xf32> to vector<128x32xf32>
    %16 = arith.mulf %6, %15 : vector<128x32xf32>
    %17 = arith.truncf %16 : vector<128x32xf32> to vector<128x32xbf16>
    %c0_5 = arith.constant 0 : index
    %c0_6 = arith.constant 0 : index
    %18 = vector.load %arg2[%c0_5, %c0_6] : memref<32x128xbf16, #tpu.memory_space<vmem>>, vector<32x128xbf16>
    %cst_7 = arith.constant dense<0.000000e+00> : vector<128x128xf32>
    %19 = tpu.matmul %17, %18, %cst_7 {dimension_numbers = #tpu.dot_dimension_numbers<[1], [0], [0], [1], [0, 0, 1, 1], [], []>} : vector<128x32xbf16>, vector<32x128xbf16>, vector<128x128xf32> -> vector<128x128xf32>
    %c0_8 = arith.constant 0 : index
    %c0_9 = arith.constant 0 : index
    %20 = vector.load %arg3[%c0_8, %c0_9] : memref<1x128xf32, #tpu.memory_space<vmem>>, vector<1x128xf32>
    %21 = vector.broadcast %20 : vector<1x128xf32> to vector<128x128xf32>
    %22 = arith.addf %19, %21 : vector<128x128xf32>
    %c0_10 = arith.constant 0 : index
    %c0_11 = arith.constant 0 : index
    %23 = vector.load %arg1[%c0_10, %c0_11] : memref<128x128xbf16, #tpu.memory_space<vmem>>, vector<128x128xbf16>
    %24 = arith.truncf %22 : vector<128x128xf32> to vector<128x128xbf16>
    %cst_12 = arith.constant dense<0.000000e+00> : vector<128x128xf32>
    %25 = tpu.matmul %23, %24, %cst_12 {dimension_numbers = #tpu.dot_dimension_numbers<[1], [0], [0], [1], [0, 0, 1, 1], [], []>} : vector<128x128xbf16>, vector<128x128xbf16>, vector<128x128xf32> -> vector<128x128xf32>
    %cst_13 = arith.constant 0.000000e+00 : f32
    %26 = vector.broadcast %cst_13 : f32 to vector<128x128xf32>
    %27 = arith.maximumf %25, %26 : vector<128x128xf32>
    %28 = arith.truncf %27 : vector<128x128xf32> to vector<128x128xbf16>
    %c0_14 = arith.constant 0 : index
    %c0_15 = arith.constant 0 : index
    %29 = vector.load %arg4[%c0_14, %c0_15] : memref<128x128xbf16, #tpu.memory_space<vmem>>, vector<128x128xbf16>
    %cst_16 = arith.constant dense<0.000000e+00> : vector<128x128xf32>
    %30 = tpu.matmul %28, %29, %cst_16 {dimension_numbers = #tpu.dot_dimension_numbers<[1], [0], [0], [1], [0, 0, 1, 1], [], []>} : vector<128x128xbf16>, vector<128x128xbf16>, vector<128x128xf32> -> vector<128x128xf32>
    %c0_17 = arith.constant 0 : index
    %c0_18 = arith.constant 0 : index
    %31 = vector.load %arg5[%c0_17, %c0_18] : memref<1x128xf32, #tpu.memory_space<vmem>>, vector<1x128xf32>
    %32 = vector.broadcast %31 : vector<1x128xf32> to vector<128x128xf32>
    %33 = arith.addf %30, %32 : vector<128x128xf32>
    %34 = arith.truncf %33 : vector<128x128xf32> to vector<128x128xbf16>
    %cst_19 = arith.constant dense<0.000000e+00> : vector<128x128xf32>
    %35 = tpu.matmul %23, %34, %cst_19 {dimension_numbers = #tpu.dot_dimension_numbers<[1], [0], [0], [1], [0, 0, 1, 1], [], []>} : vector<128x128xbf16>, vector<128x128xbf16>, vector<128x128xf32> -> vector<128x128xf32>
    %36 = tpu.iota {dimensions = array<i32: 1>} : vector<128x128xi32>
    %c8_i32 = arith.constant 8 : i32
    %37 = vector.broadcast %c8_i32 : i32 to vector<128x128xi32>
    %38 = arith.cmpi slt, %36, %37 : vector<128x128xi32>
    %cst_20 = arith.constant -1.000000e+30 : f32
    %39 = vector.broadcast %cst_20 : f32 to vector<128x128xf32>
    %40 = arith.select %38, %35, %39 : vector<128x128xi1>, vector<128x128xf32>
    %cst_21 = arith.constant dense<0xFF800000> : vector<128xf32>
    %41 = vector.multi_reduction <maximumf>, %40, %cst_21 [1] : vector<128x128xf32> to vector<128xf32>
    %42 = vector.shape_cast %41 : vector<128xf32> to vector<128x1xf32>
    %43 = vector.broadcast %42 : vector<128x1xf32> to vector<128x128xf32>
    %44 = arith.subf %40, %43 : vector<128x128xf32>
    %45 = math.exp %44 : vector<128x128xf32>
    %cst_22 = arith.constant dense<0.000000e+00> : vector<128xf32>
    %46 = vector.multi_reduction <add>, %45, %cst_22 [1] : vector<128x128xf32> to vector<128xf32>
    %47 = vector.shape_cast %46 : vector<128xf32> to vector<128x1xf32>
    %48 = math.log %47 : vector<128x1xf32>
    %49 = vector.broadcast %48 : vector<128x1xf32> to vector<128x128xf32>
    %50 = arith.subf %44, %49 : vector<128x128xf32>
    %c0_23 = arith.constant 0 : index
    %c0_24 = arith.constant 0 : index
    %51 = vector.load %arg6[%c0_23, %c0_24] : memref<128x128xf32, #tpu.memory_space<vmem>>, vector<128x128xf32>
    tpu.vector_store %arg6[%c0_23, %c0_24], %50 {strides = array<i32>} : memref<128x128xf32, #tpu.memory_space<vmem>>, vector<128x128xf32>,
    return
  }
}

</mosaic_0001>

<llo_original>
// kernel: tpu_custom_call.1
$region0: #{tpu_custom_call.1}
  #allocation0 [shape = 'u32[]', space=smem, size = 0x4, offset = 0x4, fixed_abs, tag = 'smem constant byte address 0x4 - core index']
  #allocation1 [shape = 'u32[144,128]{1,0:T(1,128)}', space=vmem, size = 0x12000, scoped, tag = 'internal scratch']
  %s0 = inlined_call_operand.vmem [shape: f32[128,32], index: 0, kind: input, shape index: {}]
  %s1 = inlined_call_operand.vmem [shape: bf16[128,128], index: 1, kind: input, shape index: {}]
  %s2 = inlined_call_operand.vmem [shape: bf16[32,128], index: 2, kind: input, shape index: {}]
  %s3 = inlined_call_operand.vmem [shape: f32[1,128], index: 3, kind: input, shape index: {}]
  %s4 = inlined_call_operand.vmem [shape: bf16[128,128], index: 4, kind: input, shape index: {}]
  %s5 = inlined_call_operand.vmem [shape: f32[1,128], index: 5, kind: input, shape index: {}]
  %s6 = inlined_call_operand.hbm [shape: f32[128,128], index: 6, kind: output, shape index: {}]
  %s7 = sld [smem:[#allocation0]]
  $region34: #{tpu_custom_call.1} parent=0
    _
  %s9 = ssub.s32 1, %s7
  %s10 = scalar_select 0, %s9, %s7
  $region1: #{tpu_custom_call.1} parent=0
    #allocation2 [shape = 'u8[65536]{0}', space=vmem, size = 0x10000, scoped, tag = 'output window, operand 0, single buffered']
    #allocation3 [shape = 's32[1]{0}', space=sflag, size = 0x4, scoped, tag = 'scoped memory for tpu_custom_call.1']
    %11 = vsyncpa [#allocation3], 0
    // Predicated region
    $region2: #{tpu_custom_call.1} parent=1 // pred_check
      _
    $region3: #{tpu_custom_call.1} parent=1 // pred_check_branch
      %13 = sbr.rel (0) target = $region5
    $region4: #{tpu_custom_call.1} parent=1 // pred_region
      _
    $region5: #{tpu_custom_call.1} parent=1 // pred_fallthru
      _
    // Predicated region
    $region6: #{tpu_custom_call.1} parent=1 // pred_check
      _
    $region7: #{tpu_custom_call.1} parent=1 // pred_check_branch
      %15 = sbr.rel (0) target = $region9
    $region8: #{tpu_custom_call.1} parent=1 // pred_region
      _
    $region9: #{tpu_custom_call.1} parent=1 // pred_fallthru
      _
    // Predicated region
    $region10: #{tpu_custom_call.1} parent=1 // pred_check
      _
    $region11: #{tpu_custom_call.1} parent=1 // pred_check_branch
      %17 = sbr.rel (0) target = $region13
    $region12: #{tpu_custom_call.1} parent=1 // pred_region
      _
    $region13: #{tpu_custom_call.1} parent=1 // pred_fallthru
      _
    // Predicated region
    $region14: #{tpu_custom_call.1} parent=1 // pred_check
      _
    $region15: #{tpu_custom_call.1} parent=1 // pred_check_branch
      %19 = sbr.rel (0) target = $region17
    $region16: #{tpu_custom_call.1} parent=1 // pred_region
      _
    $region17: #{tpu_custom_call.1} parent=1 // pred_fallthru
      _
    // Predicated region
    $region18: #{tpu_custom_call.1} parent=1 // pred_check
      _
    $region19: #{tpu_custom_call.1} parent=1 // pred_check_branch
      %21 = sbr.rel (0) target = $region21
    $region20: #{tpu_custom_call.1} parent=1 // pred_region
      _
    $region21: #{tpu_custom_call.1} parent=1 // pred_fallthru
      _
    // Predicated region
    $region22: #{tpu_custom_call.1} parent=1 // pred_check
      _
    $region23: #{tpu_custom_call.1} parent=1 // pred_check_branch
      %23 = sbr.rel (0) target = $region25
    $region24: #{tpu_custom_call.1} parent=1 // pred_region
      _
    $region25: #{tpu_custom_call.1} parent=1 // pred_fallthru
      _
    %v25 = vld [vmem:[%s0] sm:$0xff]
    %v26 = vld [vmem:[%s0 + $0x8] sm:$0xff]
    %v27 = vld [vmem:[%s0 + $0x10] sm:$0xff]
    %v28 = vld [vmem:[%s0 + $0x18] sm:$0xff]
    %v29 = vld [vmem:[%s0 + $0x20] sm:$0xff]
    %v30 = vld [vmem:[%s0 + $0x28] sm:$0xff]
    %v31 = vld [vmem:[%s0 + $0x30] sm:$0xff]
    %v32 = vld [vmem:[%s0 + $0x38] sm:$0xff]
    %v33 = vld [vmem:[%s0 + $0x40] sm:$0xff]
    %v34 = vld [vmem:[%s0 + $0x48] sm:$0xff]
    %v35 = vld [vmem:[%s0 + $0x50] sm:$0xff]
    %v36 = vld [vmem:[%s0 + $0x58] sm:$0xff]
    %v37 = vld [vmem:[%s0 + $0x60] sm:$0xff]
    %v38 = vld [vmem:[%s0 + $0x68] sm:$0xff]
    %v39 = vld [vmem:[%s0 + $0x70] sm:$0xff]
    %v40 = vld [vmem:[%s0 + $0x78] sm:$0xff]
    %vm41 = vcmask 261120
    %v42 = vsel %vm41, %v25, 0.0
    %43 = vadd.xlane.f32.xlu0 %v42
    %v44 = vpop.xlane.xlu0 %43
    %v45 = vsel %vm41, %v26, 0.0
    %46 = vadd.xlane.f32.xlu0 %v45
    %v47 = vpop.xlane.xlu0 %46
    %v48 = vsel %vm41, %v27, 0.0
    %49 = vadd.xlane.f32.xlu0 %v48
    %v50 = vpop.xlane.xlu0 %49
    %v51 = vsel %vm41, %v28, 0.0
    %52 = vadd.xlane.f32.xlu0 %v51
    %v53 = vpop.xlane.xlu0 %52
    %v54 = vsel %vm41, %v29, 0.0
    %55 = vadd.xlane.f32.xlu0 %v54
    %v56 = vpop.xlane.xlu0 %55
    %v57 = vsel %vm41, %v30, 0.0
    %58 = vadd.xlane.f32.xlu0 %v57
    %v59 = vpop.xlane.xlu0 %58
    %v60 = vsel %vm41, %v31, 0.0
    %61 = vadd.xlane.f32.xlu0 %v60
    %v62 = vpop.xlane.xlu0 %61
    %v63 = vsel %vm41, %v32, 0.0
    %64 = vadd.xlane.f32.xlu0 %v63
    %v65 = vpop.xlane.xlu0 %64
    %v66 = vsel %vm41, %v33, 0.0
    %67 = vadd.xlane.f32.xlu0 %v66
    %v68 = vpop.xlane.xlu0 %67
    %v69 = vsel %vm41, %v34, 0.0
    %70 = vadd.xlane.f32.xlu0 %v69
    %v71 = vpop.xlane.xlu0 %70
    %v72 = vsel %vm41, %v35, 0.0
    %73 = vadd.xlane.f32.xlu0 %v72
    %v74 = vpop.xlane.xlu0 %73
    %v75 = vsel %vm41, %v36, 0.0
    %76 = vadd.xlane.f32.xlu0 %v75
    %v77 = vpop.xlane.xlu0 %76
    %v78 = vsel %vm41, %v37, 0.0
    %79 = vadd.xlane.f32.xlu0 %v78
    %v80 = vpop.xlane.xlu0 %79
    %v81 = vsel %vm41, %v38, 0.0
    %82 = vadd.xlane.f32.xlu0 %v81
    %v83 = vpop.xlane.xlu0 %82
    %v84 = vsel %vm41, %v39, 0.0
    %85 = vadd.xlane.f32.xlu0 %v84
    %v86 = vpop.xlane.xlu0 %85
    %v87 = vsel %vm41, %v40, 0.0
    %88 = vadd.xlane.f32.xlu0 %v87
    %v89 = vpop.xlane.xlu0 %88
    %v90 = vrcp.pop 32.0
    %v91 = vmul.f32 %v44, %v90
    %v92 = vmul.f32 %v47, %v90
    %v93 = vmul.f32 %v50, %v90
    %v94 = vmul.f32 %v53, %v90
    %v95 = vmul.f32 %v56, %v90
    %v96 = vmul.f32 %v59, %v90
    %v97 = vmul.f32 %v62, %v90
    %v98 = vmul.f32 %v65, %v90
    %v99 = vmul.f32 %v68, %v90
    %v100 = vmul.f32 %v71, %v90
    %v101 = vmul.f32 %v74, %v90
    %v102 = vmul.f32 %v77, %v90
    %v103 = vmul.f32 %v80, %v90
    %v104 = vmul.f32 %v83, %v90
    %v105 = vmul.f32 %v86, %v90
    %v106 = vmul.f32 %v89, %v90
    %v107 = vsub.f32 %v25, %v91
    %v108 = vsub.f32 %v26, %v92
    %v109 = vsub.f32 %v27, %v93
    %v110 = vsub.f32 %v28, %v94
    %v111 = vsub.f32 %v29, %v95
    %v112 = vsub.f32 %v30, %v96
    %v113 = vsub.f32 %v31, %v97
    %v114 = vsub.f32 %v32, %v98
    %v115 = vsub.f32 %v33, %v99
    %v116 = vsub.f32 %v34, %v100
    %v117 = vsub.f32 %v35, %v101
    %v118 = vsub.f32 %v36, %v102
    %v119 = vsub.f32 %v37, %v103
    %v120 = vsub.f32 %v38, %v104
    %v121 = vsub.f32 %v39, %v105
    %v122 = vsub.f32 %v40, %v106
    %v123 = vmul.f32 %v107, %v107
    %v124 = vmul.f32 %v108, %v108
    %v125 = vmul.f32 %v109, %v109
    %v126 = vmul.f32 %v110, %v110
    %v127 = vmul.f32 %v111, %v111
    %v128 = vmul.f32 %v112, %v112
    %v129 = vmul.f32 %v113, %v113
    %v130 = vmul.f32 %v114, %v114
    %v131 = vmul.f32 %v115, %v115
    %v132 = vmul.f32 %v116, %v116
    %v133 = vmul.f32 %v117, %v117
    %v134 = vmul.f32 %v118, %v118
    %v135 = vmul.f32 %v119, %v119
    %v136 = vmul.f32 %v120, %v120
    %v137 = vmul.f32 %v121, %v121
    %v138 = vmul.f32 %v122, %v122
    %v139 = vsel %vm41, %v123, 0.0
    %140 = vadd.xlane.f32.xlu0 %v139
    %v141 = vpop.xlane.xlu0 %140
    %v142 = vsel %vm41, %v124, 0.0
    %143 = vadd.xlane.f32.xlu0 %v142
    %v144 = vpop.xlane.xlu0 %143
    %v145 = vsel %vm41, %v125, 0.0
    %146 = vadd.xlane.f32.xlu0 %v145
    %v147 = vpop.xlane.xlu0 %146
    %v148 = vsel %vm41, %v126, 0.0
    %149 = vadd.xlane.f32.xlu0 %v148
    %v150 = vpop.xlane.xlu0 %149
    %v151 = vsel %vm41, %v127, 0.0
    %152 = vadd.xlane.f32.xlu0 %v151
    %v153 = vpop.xlane.xlu0 %152
    %v154 = vsel %vm41, %v128, 0.0
    %155 = vadd.xlane.f32.xlu0 %v154
    %v156 = vpop.xlane.xlu0 %155
    %v157 = vsel %vm41, %v129, 0.0
    %158 = vadd.xlane.f32.xlu0 %v157
    %v159 = vpop.xlane.xlu0 %158
    %v160 = vsel %vm41, %v130, 0.0
    %161 = vadd.xlane.f32.xlu0 %v160
    %v162 = vpop.xlane.xlu0 %161
    %v163 = vsel %vm41, %v131, 0.0
    %164 = vadd.xlane.f32.xlu0 %v163
    %v165 = vpop.xlane.xlu0 %164
    %v166 = vsel %vm41, %v132, 0.0
    %167 = vadd.xlane.f32.xlu0 %v166
    %v168 = vpop.xlane.xlu0 %167
    %v169 = vsel %vm41, %v133, 0.0
    %170 = vadd.xlane.f32.xlu0 %v169
    %v171 = vpop.xlane.xlu0 %170
    %v172 = vsel %vm41, %v134, 0.0
    %173 = vadd.xlane.f32.xlu0 %v172
    %v174 = vpop.xlane.xlu0 %173
    %v175 = vsel %vm41, %v135, 0.0
    %176 = vadd.xlane.f32.xlu0 %v175
    %v177 = vpop.xlane.xlu0 %176
    %v178 = vsel %vm41, %v136, 0.0
    %179 = vadd.xlane.f32.xlu0 %v178
    %v180 = vpop.xlane.xlu0 %179
    %v181 = vsel %vm41, %v137, 0.0
    %182 = vadd.xlane.f32.xlu0 %v181
    %v183 = vpop.xlane.xlu0 %182
    %v184 = vsel %vm41, %v138, 0.0
    %185 = vadd.xlane.f32.xlu0 %v184
    %v186 = vpop.xlane.xlu0 %185
    %v187 = vrcp.pop 31.0
    %v188 = vmul.f32 %v141, %v187
    %v189 = vmul.f32 %v144, %v187
    %v190 = vmul.f32 %v147, %v187
    %v191 = vmul.f32 %v150, %v187
    %v192 = vmul.f32 %v153, %v187
    %v193 = vmul.f32 %v156, %v187
    %v194 = vmul.f32 %v159, %v187
    %v195 = vmul.f32 %v162, %v187
    %v196 = vmul.f32 %v165, %v187
    %v197 = vmul.f32 %v168, %v187
    %v198 = vmul.f32 %v171, %v187
    %v199 = vmul.f32 %v174, %v187
    %v200 = vmul.f32 %v177, %v187
    %v201 = vmul.f32 %v180, %v187
    %v202 = vmul.f32 %v183, %v187
    %v203 = vmul.f32 %v186, %v187
    %v204 = vadd.f32 %v188, 1e-12
    %v205 = vadd.f32 %v189, 1e-12
    %v206 = vadd.f32 %v190, 1e-12
    %v207 = vadd.f32 %v191, 1e-12
    %v208 = vadd.f32 %v192, 1e-12
    %v209 = vadd.f32 %v193, 1e-12
    %v210 = vadd.f32 %v194, 1e-12
    %v211 = vadd.f32 %v195, 1e-12
    %v212 = vadd.f32 %v196, 1e-12
    %v213 = vadd.f32 %v197, 1e-12
    %v214 = vadd.f32 %v198, 1e-12
    %v215 = vadd.f32 %v199, 1e-12
    %v216 = vadd.f32 %v200, 1e-12
    %v217 = vadd.f32 %v201, 1e-12
    %v218 = vadd.f32 %v202, 1e-12
    %v219 = vadd.f32 %v203, 1e-12
    %v220 = vrsqrt.pop %v204
    %v221 = vrsqrt.pop %v205
    %v222 = vrsqrt.pop %v206
    %v223 = vrsqrt.pop %v207
    %v224 = vrsqrt.pop %v208
    %v225 = vrsqrt.pop %v209
    %v226 = vrsqrt.pop %v210
    %v227 = vrsqrt.pop %v211
    %v228 = vrsqrt.pop %v212
    %v229 = vrsqrt.pop %v213
    %v230 = vrsqrt.pop %v214
    %v231 = vrsqrt.pop %v215
    %v232 = vrsqrt.pop %v216
    %v233 = vrsqrt.pop %v217
    %v234 = vrsqrt.pop %v218
    %v235 = vrsqrt.pop %v219
    %v236 = vmul.f32 %v107, %v220
    %v237 = vmul.f32 %v108, %v221
    %v238 = vmul.f32 %v109, %v222
    %v239 = vmul.f32 %v110, %v223
    %v240 = vmul.f32 %v111, %v224
    %v241 = vmul.f32 %v112, %v225
    %v242 = vmul.f32 %v113, %v226
    %v243 = vmul.f32 %v114, %v227
    %v244 = vmul.f32 %v115, %v228
    %v245 = vmul.f32 %v116, %v229
    %v246 = vmul.f32 %v117, %v230
    %v247 = vmul.f32 %v118, %v231
    %v248 = vmul.f32 %v119, %v232
    %v249 = vmul.f32 %v120, %v233
    %v250 = vmul.f32 %v121, %v234
    %v251 = vmul.f32 %v122, %v235
    %v252 = vpack.c.bf16 %v237, %v236
    %v253 = vpack.c.bf16 %v239, %v238
    %v254 = vpack.c.bf16 %v241, %v240
    %v255 = vpack.c.bf16 %v243, %v242
    %v256 = vpack.c.bf16 %v245, %v244
    %v257 = vpack.c.bf16 %v247, %v246
    %v258 = vpack.c.bf16 %v249, %v248
    %v259 = vpack.c.bf16 %v251, %v250
    %v260 = vld [vmem:[%s2] sm:$0xf]
    %v261 = vld [vmem:[%s2 + $0x4] sm:$0xf]
    %v262 = vld [vmem:[%s2 + $0x8] sm:$0xf]
    %v263 = vld [vmem:[%s2 + $0xc] sm:$0xf]
    %v264 = vld [vmem:[%s3] sm:$0x1]
    %v266 = vlaneseq
    %v267 = vshrl.u32 %v266, 7
    %v268 = vsub.s32 0, %v267
    %v269 = vrot.slane %v264, %v268
    %v275 = vunpack.c.l.b16 %v260
    %v276 = vunpack.c.l.b16 %v261
    %v277 = vunpack.c.l.b16 %v262
    %v278 = vunpack.c.l.b16 %v263
    %v279 = vpack.c.b16 %v276, %v275
    %v280 = vpack.c.b16 %v278, %v277
    %v284 = vsel %vm41, %v252, 0
    %v287 = vsel %vm41, %v253, 0
    %v290 = vsel %vm41, %v254, 0
    %v293 = vsel %vm41, %v255, 0
    %v296 = vsel %vm41, %v256, 0
    %v299 = vsel %vm41, %v257, 0
    %v302 = vsel %vm41, %v258, 0
    %v305 = vsel %vm41, %v259, 0
    %307 = vmatprep.subr.bf16.mxu0 0
    %308 = vmatpush1.bf16.msra.mxu0 %v279
    %309 = vmatprep.subr.bf16.mxu0 0
    %310 = vmatpush1.bf16.msra.mxu0 %v280
    %311 = vmatprep.subr.bf16.mxu0 0
    %312 = vmatpush1.bf16.msra.mxu0 0
    %313 = vmatprep.subr.bf16.mxu0 0
    %314 = vmatpush1.bf16.msra.mxu0 0
    %315 = vmatprep.subr.bf16.mxu0 0
    %316 = vmatpush1.bf16.msra.mxu0 0
    %317 = vmatprep.subr.bf16.mxu0 0
    %318 = vmatpush1.bf16.msra.mxu0 0
    %319 = vmatprep.subr.bf16.mxu0 0
    %320 = vmatpush1.bf16.msra.mxu0 0
    %321 = vmatprep.subr.bf16.mxu0 0
    %322 = vmatpush1.bf16.msra.mxu0 0
    %323 = vmatprep.subr.bf16.mxu0 0
    %324 = vmatpush1.bf16.msra.mxu0 0
    %325 = vmatprep.subr.bf16.mxu0 0
    %326 = vmatpush1.bf16.msra.mxu0 0
    %327 = vmatprep.subr.bf16.mxu0 0
    %328 = vmatpush1.bf16.msra.mxu0 0
    %329 = vmatprep.subr.bf16.mxu0 0
    %330 = vmatpush1.bf16.msra.mxu0 0
    %331 = vmatprep.subr.bf16.mxu0 0
    %332 = vmatpush1.bf16.msra.mxu0 0
    %333 = vmatprep.subr.bf16.mxu0 0
    %334 = vmatpush1.bf16.msra.mxu0 0
    %335 = vmatprep.subr.bf16.mxu0 0
    %336 = vmatpush1.bf16.msra.mxu0 0
    %337 = vmatprep.subr.bf16.mxu0 0
    %338 = vmatpush1.bf16.msra.mxu0 0
    %339 = vmatprep.mubr.bf16.mxu0 0
    %340 = vmatmul.mubr.bf16.gmra.mrb[0].mxu0 %v284
    %v341 = vpop.f32.mrb[0].mxu0
    %v342 = vadd.f32 %v269, %v341
    %v343 = vpop.f32.mrb[0].mxu0
    %v344 = vpop.f32.mrb[0].mxu0
    %v345 = vadd.f32 %v269, %v344
    %v346 = vpop.f32.mrb[0].mxu0
    %347 = vmatprep.mubr.bf16.mxu0 0
    %348 = vmatmul.mubr.bf16.gmra.mrb[0].mxu0 %v287
    %v349 = vpop.f32.mrb[0].mxu0
    %v350 = vadd.f32 %v269, %v349
    %v351 = vpop.f32.mrb[0].mxu0
    %v352 = vpop.f32.mrb[0].mxu0
    %v353 = vadd.f32 %v269, %v352
    %v354 = vpop.f32.mrb[0].mxu0
    %355 = vmatprep.mubr.bf16.mxu0 0
    %356 = vmatmul.mubr.bf16.gmra.mrb[0].mxu0 %v290
    %v357 = vpop.f32.mrb[0].mxu0
    %v358 = vadd.f32 %v269, %v357
    %v359 = vpop.f32.mrb[0].mxu0
    %v360 = vpop.f32.mrb[0].mxu0
    %v361 = vadd.f32 %v269, %v360
    %v362 = vpop.f32.mrb[0].mxu0
    %363 = vmatprep.mubr.bf16.mxu0 0
    %364 = vmatmul.mubr.bf16.gmra.mrb[0].mxu0 %v293
    %v365 = vpop.f32.mrb[0].mxu0
    %v366 = vadd.f32 %v269, %v365
    %v367 = vpop.f32.mrb[0].mxu0
    %v368 = vpop.f32.mrb[0].mxu0
    %v369 = vadd.f32 %v269, %v368
    %v370 = vpop.f32.mrb[0].mxu0
    %371 = vmatprep.mubr.bf16.mxu0 0
    %372 = vmatmul.mubr.bf16.gmra.mrb[0].mxu0 %v296
    %v373 = vpop.f32.mrb[0].mxu0
    %v374 = vadd.f32 %v269, %v373
    %v375 = vpop.f32.mrb[0].mxu0
    %v376 = vpop.f32.mrb[0].mxu0
    %v377 = vadd.f32 %v269, %v376
    %v378 = vpop.f32.mrb[0].mxu0
    %379 = vmatprep.mubr.bf16.mxu0 0
    %380 = vmatmul.mubr.bf16.gmra.mrb[0].mxu0 %v299
    %v381 = vpop.f32.mrb[0].mxu0
    %v382 = vadd.f32 %v269, %v381
    %v383 = vpop.f32.mrb[0].mxu0
    %v384 = vpop.f32.mrb[0].mxu0
    %v385 = vadd.f32 %v269, %v384
    %v386 = vpop.f32.mrb[0].mxu0
    %387 = vmatprep.mubr.bf16.mxu0 0
    %388 = vmatmul.mubr.bf16.gmra.mrb[0].mxu0 %v302
    %v389 = vpop.f32.mrb[0].mxu0
    %v390 = vadd.f32 %v269, %v389
    %v391 = vpop.f32.mrb[0].mxu0
    %v392 = vpop.f32.mrb[0].mxu0
    %v393 = vadd.f32 %v269, %v392
    %v394 = vpop.f32.mrb[0].mxu0
    %395 = vmatprep.mubr.bf16.mxu0 0
    %396 = vmatmul.mubr.bf16.gmra.mrb[0].mxu0 %v305
    %v397 = vpop.f32.mrb[0].mxu0
    %v398 = vadd.f32 %v269, %v397
    %v399 = vpop.f32.mrb[0].mxu0
    %v400 = vpop.f32.mrb[0].mxu0
    %v401 = vadd.f32 %v269, %v400
    %v402 = vpop.f32.mrb[0].mxu0
    %403 = vdwg.mxu0
    %v404 = vld [vmem:[%s1] sm:$0xf]
    %v405 = vld [vmem:[%s1 + $0x4] sm:$0xf]
    %v406 = vld [vmem:[%s1 + $0x8] sm:$0xf]
    %v407 = vld [vmem:[%s1 + $0xc] sm:$0xf]
    %v408 = vld [vmem:[%s1 + $0x10] sm:$0xf]
    %v409 = vld [vmem:[%s1 + $0x14] sm:$0xf]
    %v410 = vld [vmem:[%s1 + $0x18] sm:$0xf]
    %v411 = vld [vmem:[%s1 + $0x1c] sm:$0xf]
    %v412 = vld [vmem:[%s1 + $0x20] sm:$0xf]
    %v413 = vld [vmem:[%s1 + $0x24] sm:$0xf]
    %v414 = vld [vmem:[%s1 + $0x28] sm:$0xf]
    %v415 = vld [vmem:[%s1 + $0x2c] sm:$0xf]
    %v416 = vld [vmem:[%s1 + $0x30] sm:$0xf]
    %v417 = vld [vmem:[%s1 + $0x34] sm:$0xf]
    %v418 = vld [vmem:[%s1 + $0x38] sm:$0xf]
    %v419 = vld [vmem:[%s1 + $0x3c] sm:$0xf]
    %v420 = vpack.c.bf16 %v345, %v342
    %v421 = vpack.c.bf16 %v353, %v350
    %v422 = vpack.c.bf16 %v361, %v358
    %v423 = vpack.c.bf16 %v369, %v366
    %v424 = vpack.c.bf16 %v377, %v374
    %v425 = vpack.c.bf16 %v385, %v382
    %v426 = vpack.c.bf16 %v393, %v390
    %v427 = vpack.c.bf16 %v401, %v398
    %v444 = vunpack.c.l.b16 %v404
    %v445 = vunpack.c.l.b16 %v405
    %v446 = vunpack.c.l.b16 %v406
    %v447 = vunpack.c.l.b16 %v407
    %v448 = vunpack.c.l.b16 %v408
    %v449 = vunpack.c.l.b16 %v409
    %v450 = vunpack.c.l.b16 %v410
    %v451 = vunpack.c.l.b16 %v411
    %v452 = vunpack.c.l.b16 %v412
    %v453 = vunpack.c.l.b16 %v413
    %v454 = vunpack.c.l.b16 %v414
    %v455 = vunpack.c.l.b16 %v415
    %v456 = vunpack.c.l.b16 %v416
    %v457 = vunpack.c.l.b16 %v417
    %v458 = vunpack.c.l.b16 %v418
    %v459 = vunpack.c.l.b16 %v419
    %v460 = vpack.c.b16 %v445, %v444
    %v461 = vpack.c.b16 %v447, %v446
    %v462 = vpack.c.b16 %v449, %v448
    %v463 = vpack.c.b16 %v451, %v450
    %v464 = vpack.c.b16 %v453, %v452
    %v465 = vpack.c.b16 %v455, %v454
    %v466 = vpack.c.b16 %v457, %v456
    %v467 = vpack.c.b16 %v459, %v458
    %476 = vmatprep.subr.bf16.mxu0 0
    %477 = vmatpush1.bf16.msra.mxu0 %v420
    %478 = vmatprep.subr.bf16.mxu0 0
    %479 = vmatpush1.bf16.msra.mxu0 %v421
    %480 = vmatprep.subr.bf16.mxu0 0
    %481 = vmatpush1.bf16.msra.mxu0 %v422
    %482 = vmatprep.subr.bf16.mxu0 0
    %483 = vmatpush1.bf16.msra.mxu0 %v423
    %484 = vmatprep.subr.bf16.mxu0 0
    %485 = vmatpush1.bf16.msra.mxu0 %v424
    %486 = vmatprep.subr.bf16.mxu0 0
    %487 = vmatpush1.bf16.msra.mxu0 %v425
    %488 = vmatprep.subr.bf16.mxu0 0
    %489 = vmatpush1.bf16.msra.mxu0 %v426
    %490 = vmatprep.subr.bf16.mxu0 0
    %491 = vmatpush1.bf16.msra.mxu0 %v427
    %492 = vmatprep.subr.bf16.mxu0 0
    %493 = vmatpush1.bf16.msra.mxu0 0
    %494 = vmatprep.subr.bf16.mxu0 0
    %495 = vmatpush1.bf16.msra.mxu0 0
    %496 = vmatprep.subr.bf16.mxu0 0
    %497 = vmatpush1.bf16.msra.mxu0 0
    %498 = vmatprep.subr.bf16.mxu0 0
    %499 = vmatpush1.bf16.msra.mxu0 0
    %500 = vmatprep.subr.bf16.mxu0 0
    %501 = vmatpush1.bf16.msra.mxu0 0
    %502 = vmatprep.subr.bf16.mxu0 0
    %503 = vmatpush1.bf16.msra.mxu0 0
    %504 = vmatprep.subr.bf16.mxu0 0
    %505 = vmatpush1.bf16.msra.mxu0 0
    %506 = vmatprep.subr.bf16.mxu0 0
    %507 = vmatpush1.bf16.msra.mxu0 0
    %508 = vmatprep.mubr.bf16.mxu0 0
    %509 = vmatmul.mubr.bf16.gmra.mrb[0].mxu0 %v460
    %v510 = vpop.f32.mrb[0].mxu0
    %v511 = vadd.f32 0.0, %v510
    %v512 = vpop.f32.mrb[0].mxu0
    %v513 = vpop.f32.mrb[0].mxu0
    %v514 = vadd.f32 0.0, %v513
    %v515 = vpop.f32.mrb[0].mxu0
    %516 = vmatprep.mubr.bf16.mxu0 0
    %517 = vmatmul.mubr.bf16.gmra.mrb[0].mxu0 %v461
    %v518 = vpop.f32.mrb[0].mxu0
    %v519 = vadd.f32 0.0, %v518
    %v520 = vpop.f32.mrb[0].mxu0
    %v521 = vpop.f32.mrb[0].mxu0
    %v522 = vadd.f32 0.0, %v521
    %v523 = vpop.f32.mrb[0].mxu0
    %524 = vmatprep.mubr.bf16.mxu0 0
    %525 = vmatmul.mubr.bf16.gmra.mrb[0].mxu0 %v462
    %v526 = vpop.f32.mrb[0].mxu0
    %v527 = vadd.f32 0.0, %v526
    %v528 = vpop.f32.mrb[0].mxu0
    %v529 = vpop.f32.mrb[0].mxu0
    %v530 = vadd.f32 0.0, %v529
    %v531 = vpop.f32.mrb[0].mxu0
    %532 = vmatprep.mubr.bf16.mxu0 0
    %533 = vmatmul.mubr.bf16.gmra.mrb[0].mxu0 %v463
    %v534 = vpop.f32.mrb[0].mxu0
    %v535 = vadd.f32 0.0, %v534
    %v536 = vpop.f32.mrb[0].mxu0
    %v537 = vpop.f32.mrb[0].mxu0
    %v538 = vadd.f32 0.0, %v537
    %v539 = vpop.f32.mrb[0].mxu0
    %540 = vmatprep.mubr.bf16.mxu0 0
    %541 = vmatmul.mubr.bf16.gmra.mrb[0].mxu0 %v464
    %v542 = vpop.f32.mrb[0].mxu0
    %v543 = vadd.f32 0.0, %v542
    %v544 = vpop.f32.mrb[0].mxu0
    %v545 = vpop.f32.mrb[0].mxu0
    %v546 = vadd.f32 0.0, %v545
    %v547 = vpop.f32.mrb[0].mxu0
    %548 = vmatprep.mubr.bf16.mxu0 0
    %549 = vmatmul.mubr.bf16.gmra.mrb[0].mxu0 %v465
    %v550 = vpop.f32.mrb[0].mxu0
    %v551 = vadd.f32 0.0, %v550
    %v552 = vpop.f32.mrb[0].mxu0
    %v553 = vpop.f32.mrb[0].mxu0
    %v554 = vadd.f32 0.0, %v553
    %v555 = vpop.f32.mrb[0].mxu0
    %556 = vmatprep.mubr.bf16.mxu0 0
    %557 = vmatmul.mubr.bf16.gmra.mrb[0].mxu0 %v466
    %v558 = vpop.f32.mrb[0].mxu0
    %v559 = vadd.f32 0.0, %v558
    %v560 = vpop.f32.mrb[0].mxu0
    %v561 = vpop.f32.mrb[0].mxu0
    %v562 = vadd.f32 0.0, %v561
    %v563 = vpop.f32.mrb[0].mxu0
    %564 = vmatprep.mubr.bf16.mxu0 0
    %565 = vmatmul.mubr.bf16.gmra.mrb[0].mxu0 %v467
    %v566 = vpop.f32.mrb[0].mxu0
    %v567 = vadd.f32 0.0, %v566
    %v568 = vpop.f32.mrb[0].mxu0
    %v569 = vpop.f32.mrb[0].mxu0
    %v570 = vadd.f32 0.0, %v569
    %v571 = vpop.f32.mrb[0].mxu0
    %572 = vdwg.mxu0
    %v573 = vmax.f32 %v511, 0.0
    %v574 = vmax.f32 %v514, 0.0
    %v575 = vmax.f32 %v519, 0.0
    %v576 = vmax.f32 %v522, 0.0
    %v577 = vmax.f32 %v527, 0.0
    %v578 = vmax.f32 %v530, 0.0
    %v579 = vmax.f32 %v535, 0.0
    %v580 = vmax.f32 %v538, 0.0
    %v581 = vmax.f32 %v543, 0.0
    %v582 = vmax.f32 %v546, 0.0
    %v583 = vmax.f32 %v551, 0.0
    %v584 = vmax.f32 %v554, 0.0
    %v585 = vmax.f32 %v559, 0.0
    %v586 = vmax.f32 %v562, 0.0
    %v587 = vmax.f32 %v567, 0.0
    %v588 = vmax.f32 %v570, 0.0
    %v589 = vpack.c.bf16 %v574, %v573
    %v590 = vpack.c.bf16 %v576, %v575
    %v591 = vpack.c.bf16 %v578, %v577
    %v592 = vpack.c.bf16 %v580, %v579
    %v593 = vpack.c.bf16 %v582, %v581
    %v594 = vpack.c.bf16 %v584, %v583
    %v595 = vpack.c.bf16 %v586, %v585
    %v596 = vpack.c.bf16 %v588, %v587
    %v597 = vld [vmem:[%s4] sm:$0xf]
    %v598 = vld [vmem:[%s4 + $0x4] sm:$0xf]
    %v599 = vld [vmem:[%s4 + $0x8] sm:$0xf]
    %v600 = vld [vmem:[%s4 + $0xc] sm:$0xf]
    %v601 = vld [vmem:[%s4 + $0x10] sm:$0xf]
    %v602 = vld [vmem:[%s4 + $0x14] sm:$0xf]
    %v603 = vld [vmem:[%s4 + $0x18] sm:$0xf]
    %v604 = vld [vmem:[%s4 + $0x1c] sm:$0xf]
    %v605 = vld [vmem:[%s4 + $0x20] sm:$0xf]
    %v606 = vld [vmem:[%s4 + $0x24] sm:$0xf]
    %v607 = vld [vmem:[%s4 + $0x28] sm:$0xf]
    %v608 = vld [vmem:[%s4 + $0x2c] sm:$0xf]
    %v609 = vld [vmem:[%s4 + $0x30] sm:$0xf]
    %v610 = vld [vmem:[%s4 + $0x34] sm:$0xf]
    %v611 = vld [vmem:[%s4 + $0x38] sm:$0xf]
    %v612 = vld [vmem:[%s4 + $0x3c] sm:$0xf]
    %v613 = vld [vmem:[%s5] sm:$0x1]
    %v615 = vlaneseq
    %v616 = vshrl.u32 %v615, 7
    %v617 = vsub.s32 0, %v616
    %v618 = vrot.slane %v613, %v617
    %v636 = vunpack.c.l.b16 %v597
    %v637 = vunpack.c.l.b16 %v598
    %v638 = vunpack.c.l.b16 %v599
    %v639 = vunpack.c.l.b16 %v600
    %v640 = vunpack.c.l.b16 %v601
    %v641 = vunpack.c.l.b16 %v602
    %v642 = vunpack.c.l.b16 %v603
    %v643 = vunpack.c.l.b16 %v604
    %v644 = vunpack.c.l.b16 %v605
    %v645 = vunpack.c.l.b16 %v606
    %v646 = vunpack.c.l.b16 %v607
    %v647 = vunpack.c.l.b16 %v608
    %v648 = vunpack.c.l.b16 %v609
    %v649 = vunpack.c.l.b16 %v610
    %v650 = vunpack.c.l.b16 %v611
    %v651 = vunpack.c.l.b16 %v612
    %v652 = vpack.c.b16 %v637, %v636
    %v653 = vpack.c.b16 %v639, %v638
    %v654 = vpack.c.b16 %v641, %v640
    %v655 = vpack.c.b16 %v643, %v642
    %v656 = vpack.c.b16 %v645, %v644
    %v657 = vpack.c.b16 %v647, %v646
    %v658 = vpack.c.b16 %v649, %v648
    %v659 = vpack.c.b16 %v651, %v650
    %668 = vmatprep.subr.bf16.mxu0 0
    %669 = vmatpush1.bf16.msra.mxu0 %v652
    %670 = vmatprep.subr.bf16.mxu0 0
    %671 = vmatpush1.bf16.msra.mxu0 %v653
    %672 = vmatprep.subr.bf16.mxu0 0
    %673 = vmatpush1.bf16.msra.mxu0 %v654
    %674 = vmatprep.subr.bf16.mxu0 0
    %675 = vmatpush1.bf16.msra.mxu0 %v655
    %676 = vmatprep.subr.bf16.mxu0 0
    %677 = vmatpush1.bf16.msra.mxu0 %v656
    %678 = vmatprep.subr.bf16.mxu0 0
    %679 = vmatpush1.bf16.msra.mxu0 %v657
    %680 = vmatprep.subr.bf16.mxu0 0
    %681 = vmatpush1.bf16.msra.mxu0 %v658
    %682 = vmatprep.subr.bf16.mxu0 0
    %683 = vmatpush1.bf16.msra.mxu0 %v659
    %684 = vmatprep.subr.bf16.mxu0 0
    %685 = vmatpush1.bf16.msra.mxu0 0
    %686 = vmatprep.subr.bf16.mxu0 0
    %687 = vmatpush1.bf16.msra.mxu0 0
    %688 = vmatprep.subr.bf16.mxu0 0
    %689 = vmatpush1.bf16.msra.mxu0 0
    %690 = vmatprep.subr.bf16.mxu0 0
    %691 = vmatpush1.bf16.msra.mxu0 0
    %692 = vmatprep.subr.bf16.mxu0 0
    %693 = vmatpush1.bf16.msra.mxu0 0
    %694 = vmatprep.subr.bf16.mxu0 0
    %695 = vmatpush1.bf16.msra.mxu0 0
    %696 = vmatprep.subr.bf16.mxu0 0
    %697 = vmatpush1.bf16.msra.mxu0 0
    %698 = vmatprep.subr.bf16.mxu0 0
    %699 = vmatpush1.bf16.msra.mxu0 0
    %700 = vmatprep.mubr.bf16.mxu0 0
    %701 = vmatmul.mubr.bf16.gmra.mrb[0].mxu0 %v589
    %v702 = vpop.f32.mrb[0].mxu0
    %v703 = vadd.f32 %v618, %v702
    %v704 = vpop.f32.mrb[0].mxu0
    %v705 = vpop.f32.mrb[0].mxu0
    %v706 = vadd.f32 %v618, %v705
    %v707 = vpop.f32.mrb[0].mxu0
    %708 = vmatprep.mubr.bf16.mxu0 0
    %709 = vmatmul.mubr.bf16.gmra.mrb[0].mxu0 %v590
    %v710 = vpop.f32.mrb[0].mxu0
    %v711 = vadd.f32 %v618, %v710
    %v712 = vpop.f32.mrb[0].mxu0
    %v713 = vpop.f32.mrb[0].mxu0
    %v714 = vadd.f32 %v618, %v713
    %v715 = vpop.f32.mrb[0].mxu0
    %716 = vmatprep.mubr.bf16.mxu0 0
    %717 = vmatmul.mubr.bf16.gmra.mrb[0].mxu0 %v591
    %v718 = vpop.f32.mrb[0].mxu0
    %v719 = vadd.f32 %v618, %v718
    %v720 = vpop.f32.mrb[0].mxu0
    %v721 = vpop.f32.mrb[0].mxu0
    %v722 = vadd.f32 %v618, %v721
    %v723 = vpop.f32.mrb[0].mxu0
    %724 = vmatprep.mubr.bf16.mxu0 0
    %725 = vmatmul.mubr.bf16.gmra.mrb[0].mxu0 %v592
    %v726 = vpop.f32.mrb[0].mxu0
    %v727 = vadd.f32 %v618, %v726
    %v728 = vpop.f32.mrb[0].mxu0
    %v729 = vpop.f32.mrb[0].mxu0
    %v730 = vadd.f32 %v618, %v729
    %v731 = vpop.f32.mrb[0].mxu0
    %732 = vmatprep.mubr.bf16.mxu0 0
    %733 = vmatmul.mubr.bf16.gmra.mrb[0].mxu0 %v593
    %v734 = vpop.f32.mrb[0].mxu0
    %v735 = vadd.f32 %v618, %v734
    %v736 = vpop.f32.mrb[0].mxu0
    %v737 = vpop.f32.mrb[0].mxu0
    %v738 = vadd.f32 %v618, %v737
    %v739 = vpop.f32.mrb[0].mxu0
    %740 = vmatprep.mubr.bf16.mxu0 0
    %741 = vmatmul.mubr.bf16.gmra.mrb[0].mxu0 %v594
    %v742 = vpop.f32.mrb[0].mxu0
    %v743 = vadd.f32 %v618, %v742
    %v744 = vpop.f32.mrb[0].mxu0
    %v745 = vpop.f32.mrb[0].mxu0
    %v746 = vadd.f32 %v618, %v745
    %v747 = vpop.f32.mrb[0].mxu0
    %748 = vmatprep.mubr.bf16.mxu0 0
    %749 = vmatmul.mubr.bf16.gmra.mrb[0].mxu0 %v595
    %v750 = vpop.f32.mrb[0].mxu0
    %v751 = vadd.f32 %v618, %v750
    %v752 = vpop.f32.mrb[0].mxu0
    %v753 = vpop.f32.mrb[0].mxu0
    %v754 = vadd.f32 %v618, %v753
    %v755 = vpop.f32.mrb[0].mxu0
    %756 = vmatprep.mubr.bf16.mxu0 0
    %757 = vmatmul.mubr.bf16.gmra.mrb[0].mxu0 %v596
    %v758 = vpop.f32.mrb[0].mxu0
    %v759 = vadd.f32 %v618, %v758
    %v760 = vpop.f32.mrb[0].mxu0
    %v761 = vpop.f32.mrb[0].mxu0
    %v762 = vadd.f32 %v618, %v761
    %v763 = vpop.f32.mrb[0].mxu0
    %764 = vdwg.mxu0
    %v765 = vpack.c.bf16 %v706, %v703
    %v766 = vpack.c.bf16 %v714, %v711
    %v767 = vpack.c.bf16 %v722, %v719
    %v768 = vpack.c.bf16 %v730, %v727
    %v769 = vpack.c.bf16 %v738, %v735
    %v770 = vpack.c.bf16 %v746, %v743
    %v771 = vpack.c.bf16 %v754, %v751
    %v772 = vpack.c.bf16 %v762, %v759
    %773 = vmatprep.subr.bf16.mxu0 0
    %774 = vmatpush1.bf16.msra.mxu0 %v765
    %775 = vmatprep.subr.bf16.mxu0 0
    %776 = vmatpush1.bf16.msra.mxu0 %v766
    %777 = vmatprep.subr.bf16.mxu0 0
    %778 = vmatpush1.bf16.msra.mxu0 %v767
    %779 = vmatprep.subr.bf16.mxu0 0
    %780 = vmatpush1.bf16.msra.mxu0 %v768
    %781 = vmatprep.subr.bf16.mxu0 0
    %782 = vmatpush1.bf16.msra.mxu0 %v769
    %783 = vmatprep.subr.bf16.mxu0 0
    %784 = vmatpush1.bf16.msra.mxu0 %v770
    %785 = vmatprep.subr.bf16.mxu0 0
    %786 = vmatpush1.bf16.msra.mxu0 %v771
    %787 = vmatprep.subr.bf16.mxu0 0
    %788 = vmatpush1.bf16.msra.mxu0 %v772
    %789 = vmatprep.subr.bf16.mxu0 0
    %790 = vmatpush1.bf16.msra.mxu0 0
    %791 = vmatprep.subr.bf16.mxu0 0
    %792 = vmatpush1.bf16.msra.mxu0 0
    %793 = vmatprep.subr.bf16.mxu0 0
    %794 = vmatpush1.bf16.msra.mxu0 0
    %795 = vmatprep.subr.bf16.mxu0 0
    %796 = vmatpush1.bf16.msra.mxu0 0
    %797 = vmatprep.subr.bf16.mxu0 0
    %798 = vmatpush1.bf16.msra.mxu0 0
    %799 = vmatprep.subr.bf16.mxu0 0
    %800 = vmatpush1.bf16.msra.mxu0 0
    %801 = vmatprep.subr.bf16.mxu0 0
    %802 = vmatpush1.bf16.msra.mxu0 0
    %803 = vmatprep.subr.bf16.mxu0 0
    %804 = vmatpush1.bf16.msra.mxu0 0
    %805 = vmatprep.mubr.bf16.mxu0 0
    %806 = vmatmul.mubr.bf16.gmra.mrb[0].mxu0 %v460
    %v807 = vpop.f32.mrb[0].mxu0
    %v808 = vadd.f32 0.0, %v807
    %v809 = vpop.f32.mrb[0].mxu0
    %v810 = vpop.f32.mrb[0].mxu0
    %v811 = vadd.f32 0.0, %v810
    %v812 = vpop.f32.mrb[0].mxu0
    %813 = vmatprep.mubr.bf16.mxu0 0
    %814 = vmatmul.mubr.bf16.gmra.mrb[0].mxu0 %v461
    %v815 = vpop.f32.mrb[0].mxu0
    %v816 = vadd.f32 0.0, %v815
    %v817 = vpop.f32.mrb[0].mxu0
    %v818 = vpop.f32.mrb[0].mxu0
    %v819 = vadd.f32 0.0, %v818
    %v820 = vpop.f32.mrb[0].mxu0
    %821 = vmatprep.mubr.bf16.mxu0 0
    %822 = vmatmul.mubr.bf16.gmra.mrb[0].mxu0 %v462
    %v823 = vpop.f32.mrb[0].mxu0
    %v824 = vadd.f32 0.0, %v823
    %v825 = vpop.f32.mrb[0].mxu0
    %v826 = vpop.f32.mrb[0].mxu0
    %v827 = vadd.f32 0.0, %v826
    %v828 = vpop.f32.mrb[0].mxu0
    %829 = vmatprep.mubr.bf16.mxu0 0
    %830 = vmatmul.mubr.bf16.gmra.mrb[0].mxu0 %v463
    %v831 = vpop.f32.mrb[0].mxu0
    %v832 = vadd.f32 0.0, %v831
    %v833 = vpop.f32.mrb[0].mxu0
    %v834 = vpop.f32.mrb[0].mxu0
    %v835 = vadd.f32 0.0, %v834
    %v836 = vpop.f32.mrb[0].mxu0
    %837 = vmatprep.mubr.bf16.mxu0 0
    %838 = vmatmul.mubr.bf16.gmra.mrb[0].mxu0 %v464
    %v839 = vpop.f32.mrb[0].mxu0
    %v840 = vadd.f32 0.0, %v839
    %v841 = vpop.f32.mrb[0].mxu0
    %v842 = vpop.f32.mrb[0].mxu0
    %v843 = vadd.f32 0.0, %v842
    %v844 = vpop.f32.mrb[0].mxu0
    %845 = vmatprep.mubr.bf16.mxu0 0
    %846 = vmatmul.mubr.bf16.gmra.mrb[0].mxu0 %v465
    %v847 = vpop.f32.mrb[0].mxu0
    %v848 = vadd.f32 0.0, %v847
    %v849 = vpop.f32.mrb[0].mxu0
    %v850 = vpop.f32.mrb[0].mxu0
    %v851 = vadd.f32 0.0, %v850
    %v852 = vpop.f32.mrb[0].mxu0
    %853 = vmatprep.mubr.bf16.mxu0 0
    %854 = vmatmul.mubr.bf16.gmra.mrb[0].mxu0 %v466
    %v855 = vpop.f32.mrb[0].mxu0
    %v856 = vadd.f32 0.0, %v855
    %v857 = vpop.f32.mrb[0].mxu0
    %v858 = vpop.f32.mrb[0].mxu0
    %v859 = vadd.f32 0.0, %v858
    %v860 = vpop.f32.mrb[0].mxu0
    %861 = vmatprep.mubr.bf16.mxu0 0
    %862 = vmatmul.mubr.bf16.gmra.mrb[0].mxu0 %v467
    %v863 = vpop.f32.mrb[0].mxu0
    %v864 = vadd.f32 0.0, %v863
    %v865 = vpop.f32.mrb[0].mxu0
    %v866 = vpop.f32.mrb[0].mxu0
    %v867 = vadd.f32 0.0, %v866
    %v868 = vpop.f32.mrb[0].mxu0
    %869 = vdwg.mxu0
    %v870 = vlaneseq
    %v871 = vand.u32 %v870, 127
    %vm872 = vcmp.lt.s32.totalorder %v871, 8
    %v873 = vsel %vm872, %v808, -1e+30
    %v874 = vsel %vm872, %v811, -1e+30
    %v875 = vsel %vm872, %v816, -1e+30
    %v876 = vsel %vm872, %v819, -1e+30
    %v877 = vsel %vm872, %v824, -1e+30
    %v878 = vsel %vm872, %v827, -1e+30
    %v879 = vsel %vm872, %v832, -1e+30
    %v880 = vsel %vm872, %v835, -1e+30
    %v881 = vsel %vm872, %v840, -1e+30
    %v882 = vsel %vm872, %v843, -1e+30
    %v883 = vsel %vm872, %v848, -1e+30
    %v884 = vsel %vm872, %v851, -1e+30
    %v885 = vsel %vm872, %v856, -1e+30
    %v886 = vsel %vm872, %v859, -1e+30
    %v887 = vsel %vm872, %v864, -1e+30
    %v888 = vsel %vm872, %v867, -1e+30
    %889 = vmax.xlane.f32.xlu0 %v873
    %v890 = vpop.xlane.xlu0 %889
    %891 = vmax.xlane.f32.xlu0 %v874
    %v892 = vpop.xlane.xlu0 %891
    %893 = vmax.xlane.f32.xlu0 %v875
    %v894 = vpop.xlane.xlu0 %893
    %895 = vmax.xlane.f32.xlu0 %v876
    %v896 = vpop.xlane.xlu0 %895
    %897 = vmax.xlane.f32.xlu0 %v877
    %v898 = vpop.xlane.xlu0 %897
    %899 = vmax.xlane.f32.xlu0 %v878
    %v900 = vpop.xlane.xlu0 %899
    %901 = vmax.xlane.f32.xlu0 %v879
    %v902 = vpop.xlane.xlu0 %901
    %903 = vmax.xlane.f32.xlu0 %v880
    %v904 = vpop.xlane.xlu0 %903
    %905 = vmax.xlane.f32.xlu0 %v881
    %v906 = vpop.xlane.xlu0 %905
    %907 = vmax.xlane.f32.xlu0 %v882
    %v908 = vpop.xlane.xlu0 %907
    %909 = vmax.xlane.f32.xlu0 %v883
    %v910 = vpop.xlane.xlu0 %909
    %911 = vmax.xlane.f32.xlu0 %v884
    %v912 = vpop.xlane.xlu0 %911
    %913 = vmax.xlane.f32.xlu0 %v885
    %v914 = vpop.xlane.xlu0 %913
    %915 = vmax.xlane.f32.xlu0 %v886
    %v916 = vpop.xlane.xlu0 %915
    %917 = vmax.xlane.f32.xlu0 %v887
    %v918 = vpop.xlane.xlu0 %917
    %919 = vmax.xlane.f32.xlu0 %v888
    %v920 = vpop.xlane.xlu0 %919
    %v921 = vsub.f32 %v873, %v890
    %v922 = vsub.f32 %v874, %v892
    %v923 = vsub.f32 %v875, %v894
    %v924 = vsub.f32 %v876, %v896
    %v925 = vsub.f32 %v877, %v898
    %v926 = vsub.f32 %v878, %v900
    %v927 = vsub.f32 %v879, %v902
    %v928 = vsub.f32 %v880, %v904
    %v929 = vsub.f32 %v881, %v906
    %v930 = vsub.f32 %v882, %v908
    %v931 = vsub.f32 %v883, %v910
    %v932 = vsub.f32 %v884, %v912
    %v933 = vsub.f32 %v885, %v914
    %v934 = vsub.f32 %v886, %v916
    %v935 = vsub.f32 %v887, %v918
    %v936 = vsub.f32 %v888, %v920
    %v937 = vmul.f32 %v921, 1.442695
    %v938 = vpow.pop %v937
    %v939 = vmul.f32 %v922, 1.442695
    %v940 = vpow.pop %v939
    %v941 = vmul.f32 %v923, 1.442695
    %v942 = vpow.pop %v941
    %v943 = vmul.f32 %v924, 1.442695
    %v944 = vpow.pop %v943
    %v945 = vmul.f32 %v925, 1.442695
    %v946 = vpow.pop %v945
    %v947 = vmul.f32 %v926, 1.442695
    %v948 = vpow.pop %v947
    %v949 = vmul.f32 %v927, 1.442695
    %v950 = vpow.pop %v949
    %v951 = vmul.f32 %v928, 1.442695
    %v952 = vpow.pop %v951
    %v953 = vmul.f32 %v929, 1.442695
    %v954 = vpow.pop %v953
    %v955 = vmul.f32 %v930, 1.442695
    %v956 = vpow.pop %v955
    %v957 = vmul.f32 %v931, 1.442695
    %v958 = vpow.pop %v957
    %v959 = vmul.f32 %v932, 1.442695
    %v960 = vpow.pop %v959
    %v961 = vmul.f32 %v933, 1.442695
    %v962 = vpow.pop %v961
    %v963 = vmul.f32 %v934, 1.442695
    %v964 = vpow.pop %v963
    %v965 = vmul.f32 %v935, 1.442695
    %v966 = vpow.pop %v965
    %v967 = vmul.f32 %v936, 1.442695
    %v968 = vpow.pop %v967
    %969 = vadd.xlane.f32.xlu0 %v938
    %v970 = vpop.xlane.xlu0 %969
    %971 = vadd.xlane.f32.xlu0 %v940
    %v972 = vpop.xlane.xlu0 %971
    %973 = vadd.xlane.f32.xlu0 %v942
    %v974 = vpop.xlane.xlu0 %973
    %975 = vadd.xlane.f32.xlu0 %v944
    %v976 = vpop.xlane.xlu0 %975
    %977 = vadd.xlane.f32.xlu0 %v946
    %v978 = vpop.xlane.xlu0 %977
    %979 = vadd.xlane.f32.xlu0 %v948
    %v980 = vpop.xlane.xlu0 %979
    %981 = vadd.xlane.f32.xlu0 %v950
    %v982 = vpop.xlane.xlu0 %981
    %983 = vadd.xlane.f32.xlu0 %v952
    %v984 = vpop.xlane.xlu0 %983
    %985 = vadd.xlane.f32.xlu0 %v954
    %v986 = vpop.xlane.xlu0 %985
    %987 = vadd.xlane.f32.xlu0 %v956
    %v988 = vpop.xlane.xlu0 %987
    %989 = vadd.xlane.f32.xlu0 %v958
    %v990 = vpop.xlane.xlu0 %989
    %991 = vadd.xlane.f32.xlu0 %v960
    %v992 = vpop.xlane.xlu0 %991
    %993 = vadd.xlane.f32.xlu0 %v962
    %v994 = vpop.xlane.xlu0 %993
    %995 = vadd.xlane.f32.xlu0 %v964
    %v996 = vpop.xlane.xlu0 %995
    %997 = vadd.xlane.f32.xlu0 %v966
    %v998 = vpop.xlane.xlu0 %997
    %999 = vadd.xlane.f32.xlu0 %v968
    %v1000 = vpop.xlane.xlu0 %999
    %v1001 = vlog2.pop %v970
    %v1002 = vmul.f32 %v1001, 0.6931472
    %v1003 = vlog2.pop %v972
    %v1004 = vmul.f32 %v1003, 0.6931472
    %v1005 = vlog2.pop %v974
    %v1006 = vmul.f32 %v1005, 0.6931472
    %v1007 = vlog2.pop %v976
    %v1008 = vmul.f32 %v1007, 0.6931472
    %v1009 = vlog2.pop %v978
    %v1010 = vmul.f32 %v1009, 0.6931472
    %v1011 = vlog2.pop %v980
    %v1012 = vmul.f32 %v1011, 0.6931472
    %v1013 = vlog2.pop %v982
    %v1014 = vmul.f32 %v1013, 0.6931472
    %v1015 = vlog2.pop %v984
    %v1016 = vmul.f32 %v1015, 0.6931472
    %v1017 = vlog2.pop %v986
    %v1018 = vmul.f32 %v1017, 0.6931472
    %v1019 = vlog2.pop %v988
    %v1020 = vmul.f32 %v1019, 0.6931472
    %v1021 = vlog2.pop %v990
    %v1022 = vmul.f32 %v1021, 0.6931472
    %v1023 = vlog2.pop %v992
    %v1024 = vmul.f32 %v1023, 0.6931472
    %v1025 = vlog2.pop %v994
    %v1026 = vmul.f32 %v1025, 0.6931472
    %v1027 = vlog2.pop %v996
    %v1028 = vmul.f32 %v1027, 0.6931472
    %v1029 = vlog2.pop %v998
    %v1030 = vmul.f32 %v1029, 0.6931472
    %v1031 = vlog2.pop %v1000
    %v1032 = vmul.f32 %v1031, 0.6931472
    %v1033 = vsub.f32 %v921, %v1002
    %v1034 = vsub.f32 %v922, %v1004
    %v1035 = vsub.f32 %v923, %v1006
    %v1036 = vsub.f32 %v924, %v1008
    %v1037 = vsub.f32 %v925, %v1010
    %v1038 = vsub.f32 %v926, %v1012
    %v1039 = vsub.f32 %v927, %v1014
    %v1040 = vsub.f32 %v928, %v1016
    %v1041 = vsub.f32 %v929, %v1018
    %v1042 = vsub.f32 %v930, %v1020
    %v1043 = vsub.f32 %v931, %v1022
    %v1044 = vsub.f32 %v932, %v1024
    %v1045 = vsub.f32 %v933, %v1026
    %v1046 = vsub.f32 %v934, %v1028
    %v1047 = vsub.f32 %v935, %v1030
    %v1048 = vsub.f32 %v936, %v1032
    %1049 = vst [vmem:[#allocation2] sm:$0xff] %v1033
    %1050 = vst [vmem:[#allocation2 + $0x8] sm:$0xff] %v1034
    %1051 = vst [vmem:[#allocation2 + $0x10] sm:$0xff] %v1035
    %1052 = vst [vmem:[#allocation2 + $0x18] sm:$0xff] %v1036
    %1053 = vst [vmem:[#allocation2 + $0x20] sm:$0xff] %v1037
    %1054 = vst [vmem:[#allocation2 + $0x28] sm:$0xff] %v1038
    %1055 = vst [vmem:[#allocation2 + $0x30] sm:$0xff] %v1039
    %1056 = vst [vmem:[#allocation2 + $0x38] sm:$0xff] %v1040
    %1057 = vst [vmem:[#allocation2 + $0x40] sm:$0xff] %v1041
    %1058 = vst [vmem:[#allocation2 + $0x48] sm:$0xff] %v1042
    %1059 = vst [vmem:[#allocation2 + $0x50] sm:$0xff] %v1043
    %1060 = vst [vmem:[#allocation2 + $0x58] sm:$0xff] %v1044
    %1061 = vst [vmem:[#allocation2 + $0x60] sm:$0xff] %v1045
    %1062 = vst [vmem:[#allocation2 + $0x68] sm:$0xff] %v1046
    %1063 = vst [vmem:[#allocation2 + $0x70] sm:$0xff] %v1047
    %1064 = vst [vmem:[#allocation2 + $0x78] sm:$0xff] %v1048
    // Predicated region
    $region26: #{tpu_custom_call.1} parent=1 // pred_check
      _
    $region27: #{tpu_custom_call.1} parent=1 // pred_check_branch
      %1066 = sbr.rel (0) target = $region29
    $region28: #{tpu_custom_call.1} parent=1 // pred_region
      %s1068 = ssub.s32 2048, 2048
      %1069 = vsyncadd [#allocation3], %s1068
      %s1070 = sshll.u32 [#allocation2], 4
      %s1071 = int_to_ptr.vmem [resolvable:$true] %s1070
      %1076 = dma.vmem_to_hbm [thread:$0]  %s1071, 2048, %s6, [#allocation3], 128, 128, 8
    $region29: #{tpu_custom_call.1} parent=1 // pred_fallthru
      _
    // Predicated region
    $region30: #{tpu_custom_call.1} parent=1 // pred_check
      _
    $region31: #{tpu_custom_call.1} parent=1 // pred_check_branch
      %1078 = sbr.rel (0) target = $region33
    $region32: #{tpu_custom_call.1} parent=1 // pred_region
      %1079 = dma.done [#allocation3], 2048
    $region33: #{tpu_custom_call.1} parent=1 // pred_fallthru
      _
    %1080 = vsyncpa [#allocation3], 1

</llo_original>
